<compile_context>
chip_gen: v5e
topology: v5e:2x2
jax: 0.10.0
libtpu: 0.0.40
codegen_flags: <defaults>
</compile_context>

<pallas_src>
import functools

import jax
import jax.numpy as jnp
from jax.experimental import pallas as pl
from jax.experimental.pallas import tpu as pltpu


def _im2col_3x3(a, H, W, out_dtype):
    """a: (C, H*W) flattened activation -> (9*C, H*W) im2col slab.

    Row (kh*3+kw)*C + c holds channel c shifted by (kh-1, kw-1) with SAME zero
    padding (stride 1).  Built from static lane slices of a zero-extended copy
    plus two width-validity masks: no reshapes, no rolls, no gathers.
    """
    C, HW = a.shape
    a = a.astype(out_dtype)

    # Zero-extend by (W+1) lanes on each side: any tap whose source row is out
    # of the image reads these zeros; only the width wrap needs masking.
    zpad = jnp.zeros((C, W + 1), out_dtype)
    a_ext = jnp.concatenate([zpad, a, zpad], axis=1)          # (C, HW + 2W + 2)

    w_idx = jax.lax.broadcasted_iota(jnp.int32, (1, HW), 1) % W
    valid_left = w_idx >= 1                                   # taps with dw == -1
    valid_right = w_idx <= W - 2                              # taps with dw == +1

    taps = []
    for kh in range(3):
        for kw in range(3):
            d = (kh - 1) * W + (kw - 1)                       # static flat shift
            t = jax.lax.slice_in_dim(a_ext, W + 1 + d, W + 1 + d + HW, axis=1)
            if kw == 0:
                t = jnp.where(valid_left, t, jnp.zeros_like(t))
            elif kw == 2:
                t = jnp.where(valid_right, t, jnp.zeros_like(t))
            taps.append(t)                                    # (C, HW)
    return jnp.concatenate(taps, axis=0)                      # (9*C, HW)


def _bottleneck_kernel(x_ref, w1_ref, b1_ref, w2_ref, b2_ref, o_ref, *,
                       H, W, add, compute_dtype):
    """Fused cv1 + cv2 (+ shortcut) for one batch element.

    x_ref : (1, C1, H*W)   input activation (NCHW, spatial flattened on lanes)
    w1_ref: (c_, 9*C1)     cv1 weights, BN1 scale folded, compute dtype
    b1_ref: (c_, 1)        folded BN1 bias (f32)
    w2_ref: (C2, 9*c_)     cv2 weights, BN2 scale folded, compute dtype
    b2_ref: (C2, 1)        folded BN2 bias (f32)
    o_ref : (1, C2, H*W)   output (lane-dense store)
    """
    x = x_ref[0]                                              # (C1, HW)

    # ---- cv1: one MXU contraction, K = 9*C1, N = H*W on lanes ----
    col1 = _im2col_3x3(x, H, W, compute_dtype)                # (9*C1, HW)
    y1 = jnp.dot(w1_ref[...], col1, preferred_element_type=jnp.float32)
    y1 = y1 + b1_ref[...]                                     # (c_, HW) f32
    y1 = y1 * jax.nn.sigmoid(y1)                              # SiLU (f32 epilogue)

    # ---- cv2: intermediate stays on-chip; no HBM round trip ----
    col2 = _im2col_3x3(y1, H, W, compute_dtype)               # (9*c_, HW)
    y2 = jnp.dot(w2_ref[...], col2, preferred_element_type=jnp.float32)
    y2 = y2 + b2_ref[...]                                     # (C2, HW) f32
    y2 = y2 * jax.nn.sigmoid(y2)

    if add:
        # Shortcut reuses the input block already resident in VMEM.
        y2 = y2 + x.astype(jnp.float32)

    o_ref[0] = y2.astype(o_ref.dtype)


def fold_bn(gamma, beta, running_mean, running_var, eps=1e-5):
    scale = gamma / jnp.sqrt(running_var + eps)
    bias = beta - running_mean * scale
    return scale, bias


def _conv_weight_2d(w_oihw, scale, compute_dtype):
    """(Cout, Cin, 3, 3) -> (Cout, 9*Cin) with BN scale folded in.

    Column order (kh*3+kw)*Cin + ci matches the im2col row order.
    """
    cout, cin = w_oihw.shape[0], w_oihw.shape[1]
    w2d = jnp.transpose(w_oihw, (0, 2, 3, 1)).reshape(cout, 9 * cin)
    return (w2d * scale[:, None]).astype(compute_dtype)


def bottleneck_forward(x_nchw, params, shortcut=True,
                       compute_dtype=jnp.bfloat16):
    """Bottleneck.forward (inference-fused BN). NCHW in / NCHW out."""
    N, C1, H, W = x_nchw.shape
    c_ = params["w1"].shape[0]
    C2 = params["w2"].shape[0]
    assert params["w1"].shape[1] == C1 and params["w2"].shape[1] == c_
    add = bool(shortcut) and (C1 == C2)
    HW = H * W

    s1, b1 = fold_bn(params["g1"], params["b1"], params["m1"], params["v1"])
    s2, b2 = fold_bn(params["g2"], params["b2"], params["m2"], params["v2"])
    w1 = _conv_weight_2d(params["w1"], s1, compute_dtype)     # (c_, 9*C1)
    w2 = _conv_weight_2d(params["w2"], s2, compute_dtype)     # (C2, 9*c_)
    b1 = b1.reshape(c_, 1).astype(jnp.float32)
    b2 = b2.reshape(C2, 1).astype(jnp.float32)

    # Pure reshape (contiguous), no transpose, no pad, no extra HBM pass.
    x_flat = x_nchw.reshape(N, C1, HW)

    kernel = functools.partial(_bottleneck_kernel, H=H, W=W, add=add,
                               compute_dtype=compute_dtype)

    flops = 2 * N * HW * 9 * (C1 * c_ + c_ * C2)
    bytes_accessed = (x_flat.size * x_flat.dtype.itemsize
                      + w1.size * w1.dtype.itemsize
                      + w2.size * w2.dtype.itemsize
                      + (b1.size + b2.size) * 4
                      + N * C2 * HW * x_nchw.dtype.itemsize)

    out_flat = pl.pallas_call(
        kernel,
        out_shape=jax.ShapeDtypeStruct((N, C2, HW), x_nchw.dtype),
        grid_spec=pltpu.PrefetchScalarGridSpec(
            num_scalar_prefetch=0,
            grid=(N,),
            in_specs=[
                pl.BlockSpec((1, C1, HW), lambda n: (n, 0, 0)),
                pl.BlockSpec((c_, 9 * C1), lambda n: (0, 0)),
                pl.BlockSpec((c_, 1), lambda n: (0, 0)),
                pl.BlockSpec((C2, 9 * c_), lambda n: (0, 0)),
                pl.BlockSpec((C2, 1), lambda n: (0, 0)),
            ],
            out_specs=pl.BlockSpec((1, C2, HW), lambda n: (n, 0, 0)),
        ),
        compiler_params=pltpu.CompilerParams(
            dimension_semantics=("parallel",)),
        cost_estimate=pl.CostEstimate(
            flops=flops,
            transcendentals=N * HW * (c_ + C2),
            bytes_accessed=bytes_accessed),
    )(x_flat, w1, b1, w2, b2)

    return out_flat.reshape(N, C2, H, W)


# ---------------------- pure-JAX reference (for checking) ----------------------
def _ref_conv_bn_silu(x_nchw, w_oihw, scale, bias):
    y = jax.lax.conv_general_dilated(
        x_nchw, w_oihw, window_strides=(1, 1), padding="SAME",
        dimension_numbers=("NCHW", "OIHW", "NCHW"))
    y = y * scale[None, :, None, None] + bias[None, :, None, None]
    return y * jax.nn.sigmoid(y)


def _ref_bottleneck(x_nchw, params, shortcut=True):
    c1 = x_nchw.shape[1]
    c2 = params["w2"].shape[0]
    add = shortcut and (c1 == c2)
    s1, b1 = fold_bn(params["g1"], params["b1"], params["m1"], params["v1"])
    s2, b2 = fold_bn(params["g2"], params["b2"], params["m2"], params["v2"])
    y = _ref_conv_bn_silu(x_nchw, params["w1"], s1, b1)
    y = _ref_conv_bn_silu(y, params["w2"], s2, b2)
    if add:
        y = y + x_nchw
    return y


if __name__ == "__main__":
    # Bottleneck(c1=4, c2=4, shortcut=True, g=1, k=(3,3), e=0.5) -> c_ = 2
    N, c1, H, W = 2, 4, 16, 16
    c2, e = 4, 0.5
    c_ = int(c2 * e)

    key = jax.random.PRNGKey(0)
    k = jax.random.split(key, 10)
    params = {
        "w1": jax.random.normal(k[0], (c_, c1, 3, 3), jnp.float32) * 0.2,
        "g1": 1.0 + 0.1 * jax.random.normal(k[1], (c_,), jnp.float32),
        "b1": 0.1 * jax.random.normal(k[2], (c_,), jnp.float32),
        "m1": 0.1 * jax.random.normal(k[3], (c_,), jnp.float32),
        "v1": 1.0 + 0.1 * jax.random.uniform(k[4], (c_,), jnp.float32),
        "w2": jax.random.normal(k[5], (c2, c_, 3, 3), jnp.float32) * 0.2,
        "g2": 1.0 + 0.1 * jax.random.normal(k[6], (c2,), jnp.float32),
        "b2": 0.1 * jax.random.normal(k[7], (c2,), jnp.float32),
        "m2": 0.1 * jax.random.normal(k[8], (c2,), jnp.float32),
        "v2": 1.0 + 0.1 * jax.random.uniform(k[9], (c2,), jnp.float32),
    }

    x = jax.random.normal(jax.random.PRNGKey(1), (N, c1, H, W), jnp.float32)

    ref = jax.block_until_ready(_ref_bottleneck(x, params, shortcut=True))

    # f32 MXU path: tight numerical check of the fused kernel structure.
    out_f32 = jax.block_until_ready(
        bottleneck_forward(x, params, shortcut=True, compute_dtype=jnp.float32))
    assert out_f32.shape == (N, c2, H, W)
    err_f32 = float(jnp.max(jnp.abs(out_f32 - ref)))
    assert jnp.allclose(out_f32, ref, atol=5e-4, rtol=5e-4), err_f32

    # bf16 MXU path (production default for v6e/v7x): f32 accumulation +
    # f32 epilogue, so only bf16 operand rounding remains.
    out_bf16 = jax.block_until_ready(
        bottleneck_forward(x, params, shortcut=True, compute_dtype=jnp.bfloat16))
    err_bf16 = float(jnp.max(jnp.abs(out_bf16 - ref)))
    assert jnp.allclose(out_bf16, ref, atol=6e-2, rtol=6e-2), err_bf16

    print("KERNEL_OK")
</pallas_src>

<mosaic_0001>
module attributes {stable_mosaic.version = 11 : i64} {
  func.func @_bottleneck_kernel(%arg0: i32, %arg1: memref<1x4x256xf32, #tpu.memory_space<vmem>>, %arg2: memref<2x36xf32, #tpu.memory_space<vmem>>, %arg3: memref<2x1xf32, #tpu.memory_space<vmem>>, %arg4: memref<4x18xf32, #tpu.memory_space<vmem>>, %arg5: memref<4x1xf32, #tpu.memory_space<vmem>>, %arg6: memref<1x4x256xf32, #tpu.memory_space<vmem>>) attributes {dimension_semantics = [#tpu.dimension_semantics<parallel>], iteration_bounds = array<i64: 2>, scalar_prefetch = 0 : i64, scratch_operands = 0 : i64, tpu.core_type = #tpu.core_type<tc>, window_params = [{transform_indices = @transform_0, window_bounds = array<i64: 1, 4, 256>}, {pipeline_mode = #tpu.pipeline_mode<synchronous>, transform_indices = @transform_1, window_bounds = array<i64: 2, 36>}, {pipeline_mode = #tpu.pipeline_mode<synchronous>, transform_indices = @transform_2, window_bounds = array<i64: 2, 1>}, {pipeline_mode = #tpu.pipeline_mode<synchronous>, transform_indices = @transform_3, window_bounds = array<i64: 4, 18>}, {pipeline_mode = #tpu.pipeline_mode<synchronous>, transform_indices = @transform_4, window_bounds = array<i64: 4, 1>}, {transform_indices = @transform_5, window_bounds = array<i64: 1, 4, 256>}]} {
    %c0 = arith.constant 0 : index
    %c0_0 = arith.constant 0 : index
    %c0_1 = arith.constant 0 : index
    %0 = vector.load %arg1[%c0, %c0_0, %c0_1] : memref<1x4x256xf32, #tpu.memory_space<vmem>>, vector<1x4x256xf32>
    %1 = vector.shape_cast %0 : vector<1x4x256xf32> to vector<4x256xf32>
    %cst = arith.constant 0.000000e+00 : f32
    %2 = vector.broadcast %cst : f32 to vector<4x17xf32>
    %3 = tpu.concatenate %2, %1, %2 in 1 : vector<4x17xf32>, vector<4x256xf32>, vector<4x17xf32> -> vector<4x290xf32>
    %4 = tpu.iota {dimensions = array<i32: 1>} : vector<1x256xi32>
    %c16_i32 = arith.constant 16 : i32
    %c0_i32 = arith.constant 0 : i32
    %5 = arith.cmpi eq, %c16_i32, %c0_i32 : i32
    %c1_i32 = arith.constant 1 : i32
    %6 = arith.select %5, %c1_i32, %c16_i32 : i32
    %7 = vector.broadcast %6 : i32 to vector<1x256xi32>
    %8 = arith.remsi %4, %7 : vector<1x256xi32>
    %c0_i32_2 = arith.constant 0 : i32
    %9 = vector.broadcast %c0_i32_2 : i32 to vector<1x256xi32>
    %10 = arith.cmpi ne, %8, %9 : vector<1x256xi32>
    %c0_i32_3 = arith.constant 0 : i32
    %11 = vector.broadcast %c0_i32_3 : i32 to vector<1x256xi32>
    %12 = arith.cmpi slt, %8, %11 : vector<1x256xi32>
    %c0_i32_4 = arith.constant 0 : i32
    %13 = arith.cmpi slt, %6, %c0_i32_4 : i32
    %14 = vector.broadcast %13 : i1 to vector<1x256xi1>
    %15 = vector.broadcast %14 : vector<1x256xi1> to vector<1x256xi1>
    %16 = arith.xori %12, %15 : vector<1x256xi1>
    %17 = arith.andi %16, %10 : vector<1x256xi1>
    %18 = vector.broadcast %6 : i32 to vector<1x256xi32>
    %19 = arith.addi %8, %18 : vector<1x256xi32>
    %20 = arith.select %17, %19, %8 : vector<1x256xi1>, vector<1x256xi32>
    %c1_i32_5 = arith.constant 1 : i32
    %21 = vector.broadcast %c1_i32_5 : i32 to vector<1x256xi32>
    %22 = arith.cmpi sge, %20, %21 : vector<1x256xi32>
    %c14_i32 = arith.constant 14 : i32
    %23 = vector.broadcast %c14_i32 : i32 to vector<1x256xi32>
    %24 = arith.cmpi sle, %20, %23 : vector<1x256xi32>
    %25 = vector.extract_strided_slice %3 {offsets = [0, 0], sizes = [4, 256], strides = [1, 1]} : vector<4x290xf32> to vector<4x256xf32>
    %cst_6 = arith.constant 0.000000e+00 : f32
    %26 = vector.broadcast %cst_6 : f32 to vector<4x256xf32>
    %27 = vector.shape_cast %22 : vector<1x256xi1> to vector<1x256xi1>
    %28 = vector.broadcast %27 : vector<1x256xi1> to vector<4x256xi1>
    %29 = arith.select %28, %25, %26 : vector<4x256xi1>, vector<4x256xf32>
    %30 = vector.extract_strided_slice %3 {offsets = [0, 1], sizes = [4, 256], strides = [1, 1]} : vector<4x290xf32> to vector<4x256xf32>
    %31 = vector.extract_strided_slice %3 {offsets = [0, 2], sizes = [4, 256], strides = [1, 1]} : vector<4x290xf32> to vector<4x256xf32>
    %cst_7 = arith.constant 0.000000e+00 : f32
    %32 = vector.broadcast %cst_7 : f32 to vector<4x256xf32>
    %33 = vector.shape_cast %24 : vector<1x256xi1> to vector<1x256xi1>
    %34 = vector.broadcast %33 : vector<1x256xi1> to vector<4x256xi1>
    %35 = arith.select %34, %31, %32 : vector<4x256xi1>, vector<4x256xf32>
    %36 = vector.extract_strided_slice %3 {offsets = [0, 16], sizes = [4, 256], strides = [1, 1]} : vector<4x290xf32> to vector<4x256xf32>
    %cst_8 = arith.constant 0.000000e+00 : f32
    %37 = vector.broadcast %cst_8 : f32 to vector<4x256xf32>
    %38 = vector.shape_cast %22 : vector<1x256xi1> to vector<1x256xi1>
    %39 = vector.broadcast %38 : vector<1x256xi1> to vector<4x256xi1>
    %40 = arith.select %39, %36, %37 : vector<4x256xi1>, vector<4x256xf32>
    %41 = vector.extract_strided_slice %3 {offsets = [0, 17], sizes = [4, 256], strides = [1, 1]} : vector<4x290xf32> to vector<4x256xf32>
    %42 = vector.extract_strided_slice %3 {offsets = [0, 18], sizes = [4, 256], strides = [1, 1]} : vector<4x290xf32> to vector<4x256xf32>
    %cst_9 = arith.constant 0.000000e+00 : f32
    %43 = vector.broadcast %cst_9 : f32 to vector<4x256xf32>
    %44 = vector.shape_cast %24 : vector<1x256xi1> to vector<1x256xi1>
    %45 = vector.broadcast %44 : vector<1x256xi1> to vector<4x256xi1>
    %46 = arith.select %45, %42, %43 : vector<4x256xi1>, vector<4x256xf32>
    %47 = vector.extract_strided_slice %3 {offsets = [0, 32], sizes = [4, 256], strides = [1, 1]} : vector<4x290xf32> to vector<4x256xf32>
    %cst_10 = arith.constant 0.000000e+00 : f32
    %48 = vector.broadcast %cst_10 : f32 to vector<4x256xf32>
    %49 = vector.shape_cast %22 : vector<1x256xi1> to vector<1x256xi1>
    %50 = vector.broadcast %49 : vector<1x256xi1> to vector<4x256xi1>
    %51 = arith.select %50, %47, %48 : vector<4x256xi1>, vector<4x256xf32>
    %52 = vector.extract_strided_slice %3 {offsets = [0, 33], sizes = [4, 256], strides = [1, 1]} : vector<4x290xf32> to vector<4x256xf32>
    %53 = vector.extract_strided_slice %3 {offsets = [0, 34], sizes = [4, 256], strides = [1, 1]} : vector<4x290xf32> to vector<4x256xf32>
    %cst_11 = arith.constant 0.000000e+00 : f32
    %54 = vector.broadcast %cst_11 : f32 to vector<4x256xf32>
    %55 = vector.shape_cast %24 : vector<1x256xi1> to vector<1x256xi1>
    %56 = vector.broadcast %55 : vector<1x256xi1> to vector<4x256xi1>
    %57 = arith.select %56, %53, %54 : vector<4x256xi1>, vector<4x256xf32>
    %58 = tpu.concatenate %29, %30, %35, %40, %41, %46, %51, %52, %57 in 0 : vector<4x256xf32>, vector<4x256xf32>, vector<4x256xf32>, vector<4x256xf32>, vector<4x256xf32>, vector<4x256xf32>, vector<4x256xf32>, vector<4x256xf32>, vector<4x256xf32> -> vector<36x256xf32>
    %c0_12 = arith.constant 0 : index
    %c0_13 = arith.constant 0 : index
    %59 = vector.load %arg2[%c0_12, %c0_13] : memref<2x36xf32, #tpu.memory_space<vmem>>, vector<2x36xf32>
    %cst_14 = arith.constant dense<0.000000e+00> : vector<2x256xf32>
    %60 = tpu.matmul %59, %58, %cst_14 {dimension_numbers = #tpu.dot_dimension_numbers<[1], [0], [0], [1], [0, 0, 1, 1], [], []>} : vector<2x36xf32>, vector<36x256xf32>, vector<2x256xf32> -> vector<2x256xf32>
    %c0_15 = arith.constant 0 : index
    %c0_16 = arith.constant 0 : index
    %61 = vector.load %arg3[%c0_15, %c0_16] : memref<2x1xf32, #tpu.memory_space<vmem>>, vector<2x1xf32>
    %62 = vector.broadcast %61 : vector<2x1xf32> to vector<2x256xf32>
    %63 = arith.addf %60, %62 : vector<2x256xf32>
    %64 = arith.negf %63 : vector<2x256xf32>
    %65 = math.exp %64 : vector<2x256xf32>
    %cst_17 = arith.constant 1.000000e+00 : f32
    %66 = vector.broadcast %cst_17 : f32 to vector<2x256xf32>
    %67 = arith.addf %66, %65 : vector<2x256xf32>
    %68 = arith.divf %66, %67 : vector<2x256xf32>
    %69 = arith.mulf %63, %68 : vector<2x256xf32>
    %cst_18 = arith.constant 0.000000e+00 : f32
    %70 = vector.broadcast %cst_18 : f32 to vector<2x17xf32>
    %71 = tpu.concatenate %70, %69, %70 in 1 : vector<2x17xf32>, vector<2x256xf32>, vector<2x17xf32> -> vector<2x290xf32>
    %72 = tpu.iota {dimensions = array<i32: 1>} : vector<1x256xi32>
    %c16_i32_19 = arith.constant 16 : i32
    %c0_i32_20 = arith.constant 0 : i32
    %73 = arith.cmpi eq, %c16_i32_19, %c0_i32_20 : i32
    %c1_i32_21 = arith.constant 1 : i32
    %74 = arith.select %73, %c1_i32_21, %c16_i32_19 : i32
    %75 = vector.broadcast %74 : i32 to vector<1x256xi32>
    %76 = arith.remsi %72, %75 : vector<1x256xi32>
    %c0_i32_22 = arith.constant 0 : i32
    %77 = vector.broadcast %c0_i32_22 : i32 to vector<1x256xi32>
    %78 = arith.cmpi ne, %76, %77 : vector<1x256xi32>
    %c0_i32_23 = arith.constant 0 : i32
    %79 = vector.broadcast %c0_i32_23 : i32 to vector<1x256xi32>
    %80 = arith.cmpi slt, %76, %79 : vector<1x256xi32>
    %c0_i32_24 = arith.constant 0 : i32
    %81 = arith.cmpi slt, %74, %c0_i32_24 : i32
    %82 = vector.broadcast %81 : i1 to vector<1x256xi1>
    %83 = vector.broadcast %82 : vector<1x256xi1> to vector<1x256xi1>
    %84 = arith.xori %80, %83 : vector<1x256xi1>
    %85 = arith.andi %84, %78 : vector<1x256xi1>
    %86 = vector.broadcast %74 : i32 to vector<1x256xi32>
    %87 = arith.addi %76, %86 : vector<1x256xi32>
    %88 = arith.select %85, %87, %76 : vector<1x256xi1>, vector<1x256xi32>
    %c1_i32_25 = arith.constant 1 : i32
    %89 = vector.broadcast %c1_i32_25 : i32 to vector<1x256xi32>
    %90 = arith.cmpi sge, %88, %89 : vector<1x256xi32>
    %c14_i32_26 = arith.constant 14 : i32
    %91 = vector.broadcast %c14_i32_26 : i32 to vector<1x256xi32>
    %92 = arith.cmpi sle, %88, %91 : vector<1x256xi32>
    %93 = vector.extract_strided_slice %71 {offsets = [0, 0], sizes = [2, 256], strides = [1, 1]} : vector<2x290xf32> to vector<2x256xf32>
    %cst_27 = arith.constant 0.000000e+00 : f32
    %94 = vector.broadcast %cst_27 : f32 to vector<2x256xf32>
    %95 = vector.shape_cast %90 : vector<1x256xi1> to vector<1x256xi1>
    %96 = vector.broadcast %95 : vector<1x256xi1> to vector<2x256xi1>
    %97 = arith.select %96, %93, %94 : vector<2x256xi1>, vector<2x256xf32>
    %98 = vector.extract_strided_slice %71 {offsets = [0, 1], sizes = [2, 256], strides = [1, 1]} : vector<2x290xf32> to vector<2x256xf32>
    %99 = vector.extract_strided_slice %71 {offsets = [0, 2], sizes = [2, 256], strides = [1, 1]} : vector<2x290xf32> to vector<2x256xf32>
    %cst_28 = arith.constant 0.000000e+00 : f32
    %100 = vector.broadcast %cst_28 : f32 to vector<2x256xf32>
    %101 = vector.shape_cast %92 : vector<1x256xi1> to vector<1x256xi1>
    %102 = vector.broadcast %101 : vector<1x256xi1> to vector<2x256xi1>
    %103 = arith.select %102, %99, %100 : vector<2x256xi1>, vector<2x256xf32>
    %104 = vector.extract_strided_slice %71 {offsets = [0, 16], sizes = [2, 256], strides = [1, 1]} : vector<2x290xf32> to vector<2x256xf32>
    %cst_29 = arith.constant 0.000000e+00 : f32
    %105 = vector.broadcast %cst_29 : f32 to vector<2x256xf32>
    %106 = vector.shape_cast %90 : vector<1x256xi1> to vector<1x256xi1>
    %107 = vector.broadcast %106 : vector<1x256xi1> to vector<2x256xi1>
    %108 = arith.select %107, %104, %105 : vector<2x256xi1>, vector<2x256xf32>
    %109 = vector.extract_strided_slice %71 {offsets = [0, 17], sizes = [2, 256], strides = [1, 1]} : vector<2x290xf32> to vector<2x256xf32>
    %110 = vector.extract_strided_slice %71 {offsets = [0, 18], sizes = [2, 256], strides = [1, 1]} : vector<2x290xf32> to vector<2x256xf32>
    %cst_30 = arith.constant 0.000000e+00 : f32
    %111 = vector.broadcast %cst_30 : f32 to vector<2x256xf32>
    %112 = vector.shape_cast %92 : vector<1x256xi1> to vector<1x256xi1>
    %113 = vector.broadcast %112 : vector<1x256xi1> to vector<2x256xi1>
    %114 = arith.select %113, %110, %111 : vector<2x256xi1>, vector<2x256xf32>
    %115 = vector.extract_strided_slice %71 {offsets = [0, 32], sizes = [2, 256], strides = [1, 1]} : vector<2x290xf32> to vector<2x256xf32>
    %cst_31 = arith.constant 0.000000e+00 : f32
    %116 = vector.broadcast %cst_31 : f32 to vector<2x256xf32>
    %117 = vector.shape_cast %90 : vector<1x256xi1> to vector<1x256xi1>
    %118 = vector.broadcast %117 : vector<1x256xi1> to vector<2x256xi1>
    %119 = arith.select %118, %115, %116 : vector<2x256xi1>, vector<2x256xf32>
    %120 = vector.extract_strided_slice %71 {offsets = [0, 33], sizes = [2, 256], strides = [1, 1]} : vector<2x290xf32> to vector<2x256xf32>
    %121 = vector.extract_strided_slice %71 {offsets = [0, 34], sizes = [2, 256], strides = [1, 1]} : vector<2x290xf32> to vector<2x256xf32>
    %cst_32 = arith.constant 0.000000e+00 : f32
    %122 = vector.broadcast %cst_32 : f32 to vector<2x256xf32>
    %123 = vector.shape_cast %92 : vector<1x256xi1> to vector<1x256xi1>
    %124 = vector.broadcast %123 : vector<1x256xi1> to vector<2x256xi1>
    %125 = arith.select %124, %121, %122 : vector<2x256xi1>, vector<2x256xf32>
    %126 = tpu.concatenate %97, %98, %103, %108, %109, %114, %119, %120, %125 in 0 : vector<2x256xf32>, vector<2x256xf32>, vector<2x256xf32>, vector<2x256xf32>, vector<2x256xf32>, vector<2x256xf32>, vector<2x256xf32>, vector<2x256xf32>, vector<2x256xf32> -> vector<18x256xf32>
    %c0_33 = arith.constant 0 : index
    %c0_34 = arith.constant 0 : index
    %127 = vector.load %arg4[%c0_33, %c0_34] : memref<4x18xf32, #tpu.memory_space<vmem>>, vector<4x18xf32>
    %cst_35 = arith.constant dense<0.000000e+00> : vector<4x256xf32>
    %128 = tpu.matmul %127, %126, %cst_35 {dimension_numbers = #tpu.dot_dimension_numbers<[1], [0], [0], [1], [0, 0, 1, 1], [], []>} : vector<4x18xf32>, vector<18x256xf32>, vector<4x256xf32> -> vector<4x256xf32>
    %c0_36 = arith.constant 0 : index
    %c0_37 = arith.constant 0 : index
    %129 = vector.load %arg5[%c0_36, %c0_37] : memref<4x1xf32, #tpu.memory_space<vmem>>, vector<4x1xf32>
    %130 = vector.broadcast %129 : vector<4x1xf32> to vector<4x256xf32>
    %131 = arith.addf %128, %130 : vector<4x256xf32>
    %132 = arith.negf %131 : vector<4x256xf32>
    %133 = math.exp %132 : vector<4x256xf32>
    %cst_38 = arith.constant 1.000000e+00 : f32
    %134 = vector.broadcast %cst_38 : f32 to vector<4x256xf32>
    %135 = arith.addf %134, %133 : vector<4x256xf32>
    %136 = arith.divf %134, %135 : vector<4x256xf32>
    %137 = arith.mulf %131, %136 : vector<4x256xf32>
    %138 = arith.addf %137, %1 : vector<4x256xf32>
    %c0_39 = arith.constant 0 : index
    %c0_40 = arith.constant 0 : index
    %c0_41 = arith.constant 0 : index
    %139 = vector.load %arg6[%c0_39, %c0_40, %c0_41] : memref<1x4x256xf32, #tpu.memory_space<vmem>>, vector<1x4x256xf32>
    %140 = vector.shape_cast %139 : vector<1x4x256xf32> to vector<4x256xf32>
    %141 = vector.shape_cast %138 : vector<4x256xf32> to vector<1x4x256xf32>
    tpu.vector_store %arg6[%c0_39, %c0_40, %c0_41], %141 {strides = array<i32>} : memref<1x4x256xf32, #tpu.memory_space<vmem>>, vector<1x4x256xf32>,
    return
  }
  func.func @transform_0(%arg0: i32) -> (i32, i32, i32) {
    %c0_i32 = arith.constant 0 : i32
    %c0_i32_0 = arith.constant 0 : i32
    %c0_i32_1 = arith.constant 0 : i32
    return %arg0, %c0_i32, %c0_i32_0 : i32, i32, i32
  }
  func.func @transform_1(%arg0: i32) -> (i32, i32) {
    %c0_i32 = arith.constant 0 : i32
    %c0_i32_0 = arith.constant 0 : i32
    %c0_i32_1 = arith.constant 0 : i32
    return %c0_i32, %c0_i32_0 : i32, i32
  }
  func.func @transform_2(%arg0: i32) -> (i32, i32) {
    %c0_i32 = arith.constant 0 : i32
    %c0_i32_0 = arith.constant 0 : i32
    %c0_i32_1 = arith.constant 0 : i32
    return %c0_i32, %c0_i32_0 : i32, i32
  }
  func.func @transform_3(%arg0: i32) -> (i32, i32) {
    %c0_i32 = arith.constant 0 : i32
    %c0_i32_0 = arith.constant 0 : i32
    %c0_i32_1 = arith.constant 0 : i32
    return %c0_i32, %c0_i32_0 : i32, i32
  }
  func.func @transform_4(%arg0: i32) -> (i32, i32) {
    %c0_i32 = arith.constant 0 : i32
    %c0_i32_0 = arith.constant 0 : i32
    %c0_i32_1 = arith.constant 0 : i32
    return %c0_i32, %c0_i32_0 : i32, i32
  }
  func.func @transform_5(%arg0: i32) -> (i32, i32, i32) {
    %c0_i32 = arith.constant 0 : i32
    %c0_i32_0 = arith.constant 0 : i32
    %c0_i32_1 = arith.constant 0 : i32
    return %arg0, %c0_i32, %c0_i32_0 : i32, i32, i32
  }
}

</mosaic_0001>

<llo_original>
// kernel: tpu_custom_call.1
$region0: #{tpu_custom_call.1}
  #allocation0 [shape = 'u32[]', space=smem, size = 0x4, offset = 0x4, fixed_abs, tag = 'smem constant byte address 0x4 - core index']
  #allocation1 [shape = 'u32[72,128]{1,0:T(1,128)}', space=vmem, size = 0x9000, scoped, tag = 'internal scratch']
  %s0 = inlined_call_operand.hbm [shape: f32[2,4,256], index: 0, kind: input, shape index: {}]
  %s1 = inlined_call_operand.vmem [shape: f32[2,36], index: 1, kind: input, shape index: {}]
  %s2 = inlined_call_operand.vmem [shape: f32[2,1], index: 2, kind: input, shape index: {}]
  %s3 = inlined_call_operand.vmem [shape: f32[4,18], index: 3, kind: input, shape index: {}]
  %s4 = inlined_call_operand.vmem [shape: f32[4,1], index: 4, kind: input, shape index: {}]
  %s5 = inlined_call_operand.hbm [shape: f32[2,4,256], index: 5, kind: output, shape index: {}]
  %s6 = sld [smem:[#allocation0]]
  $region57: #{tpu_custom_call.1} parent=0
    _
  %s8 = ssub.s32 1, %s6
  %s9 = scalar_select 0, %s8, %s6
  $region1: #{tpu_custom_call.1} parent=0
    #allocation2 [shape = 'u8[8192]{0}', space=vmem, size = 0x2000, scoped, tag = 'input window, operand 0']
    #allocation3 [shape = 's32[2]{0}', space=sflag, size = 0x8, scoped, tag = 'scoped memory for tpu_custom_call.1']
    #allocation4 [shape = 's32[2]{0}', space=sflag, size = 0x8, scoped, tag = 'scoped memory for tpu_custom_call.1']
    #allocation5 [shape = 'u8[8192]{0}', space=vmem, size = 0x2000, scoped, tag = 'output window, operand 0']
    %10 = vsyncpa [#allocation3], 0
    %s11 = scalar_lea.sflag [#allocation3], 1
    %12 = vsyncpa %s11, 0
    %13 = vsyncpa [#allocation4], 0
    %s14 = scalar_lea.sflag [#allocation4], 1
    %15 = vsyncpa %s14, 0
    loop: start=0, step=1, limit=4
    $region2: #{tpu_custom_call.1} parent=1 // loop_pre_header
      _
    $region3: #{tpu_custom_call.1} parent=1 // loop_header
      %s17 = sphi 0, %s21
      %p18 = scmp.ge.s32.totalorder %s17, 4
      %s27 = sphi 0, %s29
      %s30 = sphi 0, %s27
      %s31 = sphi 0, %s30
      %s47 = sphi 0, %s31
      %s51 = sphi 0, %s51
      %s53 = sphi 0, %s51
      %s54 = sphi 0, %s53
      %s68 = sphi 0, %s54
      %s72 = sphi 0, %s72
      %s74 = sphi 0, %s72
      %s75 = sphi 0, %s74
      %s89 = sphi 0, %s75
      %s93 = sphi 0, %s93
      %s95 = sphi 0, %s93
      %s96 = sphi 0, %s95
      %s110 = sphi 0, %s96
      %s114 = sphi 0, %s114
      %s116 = sphi 0, %s114
      %s117 = sphi 0, %s116
      %s131 = sphi 0, %s117
      %s137 = sphi 0, %s139
      %s140 = sphi 0, %s137
      %s141 = sphi 0, %s140
      %s157 = sphi 0, %s141
    $region4: #{tpu_custom_call.1} parent=1 // loop_header_branch
      %20 = sbr.rel (%p18) target = $region8
    $region5: #{tpu_custom_call.1} parent=1 // loop_body
      %s22 = ssub.s32 %s17, 1
      %s23 = ssub.s32 %s17, 2
      %s24 = sadd.s32 %s17, 1
      %s25 = ssub.s32 %s17, %s24
      %p26 = scmp.eq.s32.totalorder %s25, 0
      %s28 = sadd.s32 %s27, 1
      %s29 = scalar_select %p26, %s27, %s28
      %p32 = pneg %p26
      %p33 = scmp.eq.s32.totalorder %s17, 1
      %p34 = por %p32, %p33
      %p35 = scmp.ne.s32.totalorder %s27, %s30
      %p36 = scmp.eq.s32.totalorder %s17, 0
      %p37 = por %p35, %p36
      %p38 = scmp.ne.s32.totalorder %s27, %s30
      %p39 = scmp.eq.s32.totalorder %s22, 1
      %p40 = por %p38, %p39
      %p41 = scmp.ne.s32.totalorder %s30, %s31
      %p42 = scmp.eq.s32.totalorder %s22, 0
      %p43 = por %p41, %p42
      %p44 = scmp.ne.s32.totalorder %s30, %s31
      %p45 = scmp.eq.s32.totalorder %s23, 1
      %p46 = por %p44, %p45
      %p48 = scmp.ne.s32.totalorder %s31, %s47
      %p49 = scmp.eq.s32.totalorder %s23, 0
      %p50 = por %p48, %p49
      %s52 = sadd.s32 %s51, 1
      %p55 = scmp.eq.s32.totalorder %s17, 1
      %p56 = scmp.ne.s32.totalorder %s51, %s53
      %p57 = scmp.eq.s32.totalorder %s17, 0
      %p58 = por %p56, %p57
      %p59 = scmp.ne.s32.totalorder %s51, %s53
      %p60 = scmp.eq.s32.totalorder %s22, 1
      %p61 = por %p59, %p60
      %p62 = scmp.ne.s32.totalorder %s53, %s54
      %p63 = scmp.eq.s32.totalorder %s22, 0
      %p64 = por %p62, %p63
      %p65 = scmp.ne.s32.totalorder %s53, %s54
      %p66 = scmp.eq.s32.totalorder %s23, 1
      %p67 = por %p65, %p66
      %p69 = scmp.ne.s32.totalorder %s54, %s68
      %p70 = scmp.eq.s32.totalorder %s23, 0
      %p71 = por %p69, %p70
      %s73 = sadd.s32 %s72, 1
      %p76 = scmp.eq.s32.totalorder %s17, 1
      %p77 = scmp.ne.s32.totalorder %s72, %s74
      %p78 = scmp.eq.s32.totalorder %s17, 0
      %p79 = por %p77, %p78
      %p80 = scmp.ne.s32.totalorder %s72, %s74
      %p81 = scmp.eq.s32.totalorder %s22, 1
      %p82 = por %p80, %p81
      %p83 = scmp.ne.s32.totalorder %s74, %s75
      %p84 = scmp.eq.s32.totalorder %s22, 0
      %p85 = por %p83, %p84
      %p86 = scmp.ne.s32.totalorder %s74, %s75
      %p87 = scmp.eq.s32.totalorder %s23, 1
      %p88 = por %p86, %p87
      %p90 = scmp.ne.s32.totalorder %s75, %s89
      %p91 = scmp.eq.s32.totalorder %s23, 0
      %p92 = por %p90, %p91
      %s94 = sadd.s32 %s93, 1
      %p97 = scmp.eq.s32.totalorder %s17, 1
      %p98 = scmp.ne.s32.totalorder %s93, %s95
      %p99 = scmp.eq.s32.totalorder %s17, 0
      %p100 = por %p98, %p99
      %p101 = scmp.ne.s32.totalorder %s93, %s95
      %p102 = scmp.eq.s32.totalorder %s22, 1
      %p103 = por %p101, %p102
      %p104 = scmp.ne.s32.totalorder %s95, %s96
      %p105 = scmp.eq.s32.totalorder %s22, 0
      %p106 = por %p104, %p105
      %p107 = scmp.ne.s32.totalorder %s95, %s96
      %p108 = scmp.eq.s32.totalorder %s23, 1
      %p109 = por %p107, %p108
      %p111 = scmp.ne.s32.totalorder %s96, %s110
      %p112 = scmp.eq.s32.totalorder %s23, 0
      %p113 = por %p111, %p112
      %s115 = sadd.s32 %s114, 1
      %p118 = scmp.eq.s32.totalorder %s17, 1
      %p119 = scmp.ne.s32.totalorder %s114, %s116
      %p120 = scmp.eq.s32.totalorder %s17, 0
      %p121 = por %p119, %p120
      %p122 = scmp.ne.s32.totalorder %s114, %s116
      %p123 = scmp.eq.s32.totalorder %s22, 1
      %p124 = por %p122, %p123
      %p125 = scmp.ne.s32.totalorder %s116, %s117
      %p126 = scmp.eq.s32.totalorder %s22, 0
      %p127 = por %p125, %p126
      %p128 = scmp.ne.s32.totalorder %s116, %s117
      %p129 = scmp.eq.s32.totalorder %s23, 1
      %p130 = por %p128, %p129
      %p132 = scmp.ne.s32.totalorder %s117, %s131
      %p133 = scmp.eq.s32.totalorder %s23, 0
      %p134 = por %p132, %p133
      %s135 = ssub.s32 %s17, %s24
      %p136 = scmp.eq.s32.totalorder %s135, 0
      %s138 = sadd.s32 %s137, 1
      %s139 = scalar_select %p136, %s137, %s138
      %p142 = pneg %p136
      %p143 = scmp.eq.s32.totalorder %s17, 1
      %p144 = por %p142, %p143
      %p145 = scmp.ne.s32.totalorder %s137, %s140
      %p146 = scmp.eq.s32.totalorder %s17, 0
      %p147 = por %p145, %p146
      %p148 = scmp.ne.s32.totalorder %s137, %s140
      %p149 = scmp.eq.s32.totalorder %s22, 1
      %p150 = por %p148, %p149
      %p151 = scmp.ne.s32.totalorder %s140, %s141
      %p152 = scmp.eq.s32.totalorder %s22, 0
      %p153 = por %p151, %p152
      %p154 = scmp.ne.s32.totalorder %s140, %s141
      %p155 = scmp.eq.s32.totalorder %s23, 1
      %p156 = por %p154, %p155
      %p158 = scmp.ne.s32.totalorder %s141, %s157
      %p159 = scmp.eq.s32.totalorder %s23, 0
      %p160 = por %p158, %p159
      %p161 = scmp.le.s32.totalorder 1, %s17
      %p162 = scmp.lt.s32.totalorder %s17, 3
      %p163 = pnand %p161, %p162
      %p164 = pneg %p163
      // Predicated region
      $region9: #{tpu_custom_call.1} parent=5 // pred_check
        _
      $region10: #{tpu_custom_call.1} parent=5 // pred_check_branch
        %166 = sbr.rel (%p163) target = $region12
      $region11: #{tpu_custom_call.1} parent=5 // pred_region
        %s167 = ssub.s32 %s17, 1
        // Predicated region
        $region13: #{tpu_custom_call.1} parent=11 // pred_check
          %p168 = pneg %p64
        $region14: #{tpu_custom_call.1} parent=11 // pred_check_branch
          %170 = sbr.rel (%p168) target = $region16
        $region15: #{tpu_custom_call.1} parent=11 // pred_region
          _
        $region16: #{tpu_custom_call.1} parent=11 // pred_fallthru
          _
        // Predicated region
        $region17: #{tpu_custom_call.1} parent=11 // pred_check
          %p171 = pneg %p85
        $region18: #{tpu_custom_call.1} parent=11 // pred_check_branch
          %173 = sbr.rel (%p171) target = $region20
        $region19: #{tpu_custom_call.1} parent=11 // pred_region
          _
        $region20: #{tpu_custom_call.1} parent=11 // pred_fallthru
          _
        // Predicated region
        $region21: #{tpu_custom_call.1} parent=11 // pred_check
          %p174 = pneg %p106
        $region22: #{tpu_custom_call.1} parent=11 // pred_check_branch
          %176 = sbr.rel (%p174) target = $region24
        $region23: #{tpu_custom_call.1} parent=11 // pred_region
          _
        $region24: #{tpu_custom_call.1} parent=11 // pred_fallthru
          _
        // Predicated region
        $region25: #{tpu_custom_call.1} parent=11 // pred_check
          %p177 = pneg %p127
        $region26: #{tpu_custom_call.1} parent=11 // pred_check_branch
          %179 = sbr.rel (%p177) target = $region28
        $region27: #{tpu_custom_call.1} parent=11 // pred_region
          _
        $region28: #{tpu_custom_call.1} parent=11 // pred_fallthru
          _
      $region12: #{tpu_custom_call.1} parent=5 // pred_fallthru
        _
      %p180 = scmp.lt.s32.totalorder %s17, 2
      // Predicated region
      $region29: #{tpu_custom_call.1} parent=5 // pred_check
        %p181 = pneg %p180
      $region30: #{tpu_custom_call.1} parent=5 // pred_check_branch
        %183 = sbr.rel (%p181) target = $region32
      $region31: #{tpu_custom_call.1} parent=5 // pred_region
        // Predicated region
        $region33: #{tpu_custom_call.1} parent=31 // pred_check
          %p184 = pneg %p37
        $region34: #{tpu_custom_call.1} parent=31 // pred_check_branch
          %186 = sbr.rel (%p184) target = $region36
        $region35: #{tpu_custom_call.1} parent=31 // pred_region
          %s187 = sand.u32 %s27, 1
          %s188 = scalar_lea.sflag [#allocation3], %s187
          %s189 = sand.u32 %s27, 1
          %s190 = smul.addr %s189, 8
          %s191 = scalar_lea.vmem [#allocation2], %s190
          %193 = vsyncadd %s188, 0
          %s194 = smul.addr %s17, 2
          %s195 = smul.addr %s194, 4
          %s196 = scalar_lea.hbm %s0, %s195
          %s198 = sshll.u32 %s196, 4
          %s199 = int_to_ptr.hbm [resolvable:$true] %s198
          %s200 = sshll.u32 %s191, 4
          %s201 = int_to_ptr.vmem [resolvable:$true] %s200
          %203 = dma.hbm_to_vmem [thread:$0]  %s199, 128, %s201, %s188
        $region36: #{tpu_custom_call.1} parent=31 // pred_fallthru
          _
      $region32: #{tpu_custom_call.1} parent=5 // pred_fallthru
        _
      %p204 = scmp.le.s32.totalorder 1, %s17
      %p205 = scmp.lt.s32.totalorder %s17, 3
      %p206 = pnand %p204, %p205
      %p207 = pneg %p206
      // Predicated region
      $region37: #{tpu_custom_call.1} parent=5 // pred_check
        _
      $region38: #{tpu_custom_call.1} parent=5 // pred_check_branch
        %209 = sbr.rel (%p206) target = $region40
      $region39: #{tpu_custom_call.1} parent=5 // pred_region
        %s210 = ssub.s32 %s17, 1
        %s211 = sand.u32 %s30, 1
        %s212 = scalar_lea.sflag [#allocation3], %s211
        %s213 = sand.u32 %s30, 1
        %s214 = smul.addr %s213, 8
        %s215 = scalar_lea.vmem [#allocation2], %s214
        // Predicated region
        $region41: #{tpu_custom_call.1} parent=39 // pred_check
          %p216 = pneg %p43
        $region42: #{tpu_custom_call.1} parent=39 // pred_check_branch
          %218 = sbr.rel (%p216) target = $region44
        $region43: #{tpu_custom_call.1} parent=39 // pred_region
          %220 = dma.done %s212, 128
        $region44: #{tpu_custom_call.1} parent=39 // pred_fallthru
          _
        %s221 = sand.u32 %s30, 1
        %s222 = scalar_lea.sflag [#allocation3], %s221
        %s223 = sand.u32 %s30, 1
        %s224 = smul.addr %s223, 8
        %s225 = scalar_lea.vmem [#allocation2], %s224
        %p226 = pneg %p43
        %p227 = pneg %p40
        %p228 = pneg %p64
        %p229 = pneg %p61
        %p230 = pneg %p85
        %p231 = pneg %p82
        %p232 = pneg %p106
        %p233 = pneg %p103
        %p234 = pneg %p127
        %p235 = pneg %p124
        %p236 = pneg %p153
        %p237 = pneg %p150
        %s238 = sand.u32 %s140, 1
        %s239 = scalar_lea.sflag [#allocation4], %s238
        %s240 = sand.u32 %s140, 1
        %s241 = smul.addr %s240, 8
        %s242 = scalar_lea.vmem [#allocation5], %s241
        %v243 = vld [vmem:[%s215] sm:$0xff]
        %245 = vst [vmem:[#allocation1] ss:$2 sm:$0xff] %v243
        %v246 = vld.sshfl [vmem:[#allocation1] sm:$0xff pattern:$0x75316420]
        %v247 = vld.sshfl [vmem:[#allocation1 + $0x8] sm:$0xff pattern:$0x75316420]
        %248 = vrot.lane.b32.xlu0 %v246, 17
        %v249 = vpop.permute.xlu0 %248
        %250 = vrot.lane.b32.xlu0 %v247, 17
        %v251 = vpop.permute.xlu0 %250
        %vm252 = vcmask 138240
        %v253 = vsel %vm252, %v249, %v251
        %v257 = vsel %vm252, 0.0, %v249
        %v258 = vsel %vm252, %v251, 0.0
        %v259 = vlaneseq
        %v260 = vand.u32 %v259, 127
        %v261 = vadd.s32 %v260, 128
        %vm262 = vcmp.lt.s32.totalorder %v260, 0
        %v263 = vsub.s32 0, %v260
        %v264 = vsel %vm262, %v263, %v260
        %v265 = vshrl.u32 %v264, 4
        %v266 = vand.u32 %v264, 15
        %v267 = vsub.s32 0, %v266
        %v268 = vsel %vm262, %v267, %v266
        %vm269 = vcmp.lt.s32.totalorder %v261, 0
        %v270 = vsub.s32 0, %v261
        %v271 = vsel %vm269, %v270, %v261
        %v272 = vshrl.u32 %v271, 4
        %v273 = vand.u32 %v271, 15
        %v274 = vsub.s32 0, %v273
        %v275 = vsel %vm269, %v274, %v273
        %vm276 = vcmp.ne.s32.totalorder %v268, 0
        %vm277 = vcmp.ne.s32.totalorder %v275, 0
        %vm278 = vcmp.lt.s32.totalorder %v268, 0
        %vm279 = vcmp.lt.s32.totalorder %v275, 0
        %vm280 = vmand %vm278, %vm276
        %vm281 = vmand %vm279, %vm277
        %v282 = vadd.s32 %v268, 16
        %v283 = vadd.s32 %v275, 16
        %v284 = vsel %vm280, %v282, %v268
        %v285 = vsel %vm281, %v283, %v275
        %vm286 = vcmp.ge.s32.totalorder %v284, 1
        %vm287 = vcmp.ge.s32.totalorder %v285, 1
        %vm288 = vcmp.le.s32.totalorder %v284, 14
        %vm289 = vcmp.le.s32.totalorder %v285, 14
        %v290 = vsel %vm286, 1, 0
        %v291 = vsel %vm287, 1, 0
        %vm292 = vcmp.eq.s32.totalorder %v290, 1
        %vm293 = vcmp.eq.s32.totalorder %v291, 1
        %v294 = vsel %vm292, %v257, 0.0
        %v295 = vsel %vm293, %v253, 0.0
        %v296 = vsel %vm288, 1, 0
        %v297 = vsel %vm289, 1, 0
        %vm298 = vcmp.eq.s32.totalorder %v296, 1
        %vm299 = vcmp.eq.s32.totalorder %v297, 1
        %302 = vrot.lane.b32.xlu0 %v257, 126
        %v303 = vpop.permute.xlu0 %302
        %304 = vrot.lane.b32.xlu0 %v253, 126
        %v305 = vpop.permute.xlu0 %304
        %306 = vrot.lane.b32.xlu0 %v258, 126
        %v307 = vpop.permute.xlu0 %306
        %vm308 = vcmask 1031168
        %v309 = vsel %vm308, %v303, %v305
        %v310 = vsel %vm308, %v305, %v307
        %v313 = vsel %vm298, %v309, 0.0
        %v314 = vsel %vm299, %v310, 0.0
        %315 = vrot.lane.b32.xlu0 %v257, 112
        %v316 = vpop.permute.xlu0 %315
        %317 = vrot.lane.b32.xlu0 %v253, 112
        %v318 = vpop.permute.xlu0 %317
        %319 = vrot.lane.b32.xlu0 %v258, 112
        %v320 = vpop.permute.xlu0 %319
        %vm321 = vcmask 916480
        %v322 = vsel %vm321, %v316, %v318
        %v323 = vsel %vm321, %v318, %v320
        %v326 = vsel %vm292, %v322, 0.0
        %v327 = vsel %vm293, %v323, 0.0
        %328 = vrot.lane.b32.xlu0 %v257, 110
        %v329 = vpop.permute.xlu0 %328
        %330 = vrot.lane.b32.xlu0 %v253, 110
        %v331 = vpop.permute.xlu0 %330
        %332 = vrot.lane.b32.xlu0 %v258, 110
        %v333 = vpop.permute.xlu0 %332
        %vm334 = vcmask 900096
        %v335 = vsel %vm334, %v329, %v331
        %v336 = vsel %vm334, %v331, %v333
        %v339 = vsel %vm298, %v335, 0.0
        %v340 = vsel %vm299, %v336, 0.0
        %341 = vrot.lane.b32.xlu0 %v257, 96
        %v342 = vpop.permute.xlu0 %341
        %343 = vrot.lane.b32.xlu0 %v253, 96
        %v344 = vpop.permute.xlu0 %343
        %345 = vrot.lane.b32.xlu0 %v258, 96
        %v346 = vpop.permute.xlu0 %345
        %vm347 = vcmask 785408
        %v348 = vsel %vm347, %v342, %v344
        %v349 = vsel %vm347, %v344, %v346
        %v352 = vsel %vm292, %v348, 0.0
        %v353 = vsel %vm293, %v349, 0.0
        %354 = vrot.lane.b32.xlu0 %v257, 94
        %v355 = vpop.permute.xlu0 %354
        %356 = vrot.lane.b32.xlu0 %v253, 94
        %v357 = vpop.permute.xlu0 %356
        %358 = vrot.lane.b32.xlu0 %v258, 94
        %v359 = vpop.permute.xlu0 %358
        %vm360 = vcmask 769024
        %v361 = vsel %vm360, %v355, %v357
        %v362 = vsel %vm360, %v357, %v359
        %v365 = vsel %vm298, %v361, 0.0
        %v366 = vsel %vm299, %v362, 0.0
        %v367 = vrot.slane %v257, 4
        %v368 = vrot.slane %v253, 4
        %v369 = vrot.slane %v258, 4
        %370 = vrot.lane.b32.xlu0 %v367, 127
        %v371 = vpop.permute.xlu0 %370
        %372 = vrot.lane.b32.xlu0 %v368, 127
        %v373 = vpop.permute.xlu0 %372
        %374 = vrot.lane.b32.xlu0 %v369, 127
        %v375 = vpop.permute.xlu0 %374
        %vm376 = vcmask 1039360
        %v377 = vsel %vm376, %v371, %v373
        %v378 = vsel %vm376, %v373, %v375
        %v383 = vrot.slane %v326, 4
        %v384 = vrot.slane %v327, 4
        %387 = vrot.lane.b32.xlu0 %v257, 111
        %v388 = vpop.permute.xlu0 %387
        %389 = vrot.lane.b32.xlu0 %v253, 111
        %v390 = vpop.permute.xlu0 %389
        %391 = vrot.lane.b32.xlu0 %v258, 111
        %v392 = vpop.permute.xlu0 %391
        %vm393 = vcmask 908288
        %v394 = vsel %vm393, %v388, %v390
        %v395 = vsel %vm393, %v390, %v392
        %v400 = vrot.slane %v339, 4
        %v401 = vrot.slane %v340, 4
        %404 = vrot.lane.b32.xlu0 %v367, 95
        %v405 = vpop.permute.xlu0 %404
        %406 = vrot.lane.b32.xlu0 %v368, 95
        %v407 = vpop.permute.xlu0 %406
        %408 = vrot.lane.b32.xlu0 %v369, 95
        %v409 = vpop.permute.xlu0 %408
        %vm410 = vcmask 777216
        %v411 = vsel %vm410, %v405, %v407
        %v412 = vsel %vm410, %v407, %v409
        %vm415 = vcmask 1043456
        %v416 = vsel %vm415, %v294, %v377
        %v417 = vsel %vm415, %v295, %v378
        %v418 = vsel %vm415, %v313, %v383
        %v419 = vsel %vm415, %v314, %v384
        %v420 = vsel %vm415, %v394, %v400
        %v421 = vsel %vm415, %v395, %v401
        %v422 = vsel %vm415, %v352, %v411
        %v423 = vsel %vm415, %v353, %v412
        %v424 = vld [vmem:[%s1] sm:$0x3]
        %v425 = vld [vmem:[%s2] sm:$0x3]
        %427 = vset.pattern.permute.xlu0 0
        %428 = vperm.xlu0 %427, %v425
        %v429 = vpop.permute.xlu0 %428
        %vm431 = vcmask 293888
        %v433 = vsel %vm431, %v424, 0
        %v436 = vsel %vm415, %v365, 0
        %v439 = vsel %vm415, %v366, 0
        %441 = vmatpush.msra.mxu0 0.0
        %442 = vmatpush.msra.mxu0 0.0
        %443 = vmatpush.msra.mxu0 0.0
        %444 = vmatpush.msra.mxu0 0.0
        %445 = vmatpush.msra.mxu0 0.0
        %446 = vmatpush.msra.mxu0 0.0
        %447 = vmatpush.msra.mxu0 0.0
        %448 = vmatpush.msra.mxu0 0.0
        %449 = vmatpush.msra.mxu0 0.0
        %450 = vmatpush.msra.mxu0 0.0
        %451 = vmatpush.msra.mxu0 0.0
        %452 = vmatpush.msra.mxu0 %v436
        %453 = vmatpush.msra.mxu0 %v422
        %454 = vmatpush.msra.mxu0 %v420
        %455 = vmatpush.msra.mxu0 %v418
        %456 = vmatpush.msra.mxu0 %v416
        %457 = vmatmul.f32.gmra.mxu0 %v433
        %v458 = vpop.f32.mrf.mxu0
        %v459 = vadd.f32 %v429, %v458
        %460 = vdwg.mxu0
        %461 = vmatpush.msra.mxu0 0.0
        %462 = vmatpush.msra.mxu0 0.0
        %463 = vmatpush.msra.mxu0 0.0
        %464 = vmatpush.msra.mxu0 0.0
        %465 = vmatpush.msra.mxu0 0.0
        %466 = vmatpush.msra.mxu0 0.0
        %467 = vmatpush.msra.mxu0 0.0
        %468 = vmatpush.msra.mxu0 0.0
        %469 = vmatpush.msra.mxu0 0.0
        %470 = vmatpush.msra.mxu0 0.0
        %471 = vmatpush.msra.mxu0 0.0
        %472 = vmatpush.msra.mxu0 %v439
        %473 = vmatpush.msra.mxu0 %v423
        %474 = vmatpush.msra.mxu0 %v421
        %475 = vmatpush.msra.mxu0 %v419
        %476 = vmatpush.msra.mxu0 %v417
        %477 = vmatmul.f32.gmra.mxu0 %v433
        %v478 = vpop.f32.mrf.mxu0
        %v479 = vadd.f32 %v429, %v478
        %480 = vdwg.mxu0
        %v481 = vxor.u32 %v459, 2147483648
        %v482 = vxor.u32 %v479, 2147483648
        %v483 = vmul.f32 %v481, 1.442695
        %v484 = vpow.pop %v483
        %v485 = vmul.f32 %v482, 1.442695
        %v486 = vpow.pop %v485
        %v487 = vadd.f32 %v484, 1.0
        %v488 = vadd.f32 %v486, 1.0
        %v489 = vrcp.pop %v487
        %v490 = vmul.f32 %v487, %v489
        %v491 = vsub.f32 1.0, %v490
        %v492 = vmul.f32 %v489, %v491
        %v493 = vadd.f32 %v489, %v492
        %vm494 = vweird.f32 %v487
        %vm495 = vweird.f32 %v489
        %vm496 = vmor %vm494, %vm495
        %v497 = vsel %vm496, %v489, %v493
        %v498 = vand.u32 2147483647, %v487
        %vm499 = vcmp.eq.f32.partialorder %v498, 8.507059e+37
        %v500 = vand.u32 %v487, 2147483648
        %v501 = vor.u32 1.1754944e-38, %v500
        %v502 = vsel %vm499, %v501, %v497
        %v503 = vmul.f32 1.0, %v502
        %v504 = vrcp.pop %v488
        %v505 = vmul.f32 %v488, %v504
        %v506 = vsub.f32 1.0, %v505
        %v507 = vmul.f32 %v504, %v506
        %v508 = vadd.f32 %v504, %v507
        %vm509 = vweird.f32 %v488
        %vm510 = vweird.f32 %v504
        %vm511 = vmor %vm509, %vm510
        %v512 = vsel %vm511, %v504, %v508
        %v513 = vand.u32 2147483647, %v488
        %vm514 = vcmp.eq.f32.partialorder %v513, 8.507059e+37
        %v515 = vand.u32 %v488, 2147483648
        %v516 = vor.u32 1.1754944e-38, %v515
        %v517 = vsel %vm514, %v516, %v512
        %v518 = vmul.f32 1.0, %v517
        %v519 = vmul.f32 %v459, %v503
        %v520 = vmul.f32 %v479, %v518
        %523 = vrot.lane.b32.xlu0 %v519, 17
        %v524 = vpop.permute.xlu0 %523
        %525 = vrot.lane.b32.xlu0 %v520, 17
        %v526 = vpop.permute.xlu0 %525
        %v527 = vsel %vm252, %v524, %v526
        %v531 = vsel %vm252, 0.0, %v524
        %v532 = vsel %vm252, %v526, 0.0
        %v533 = vsel %vm292, %v531, 0.0
        %v534 = vsel %vm293, %v527, 0.0
        %537 = vrot.lane.b32.xlu0 %v531, 126
        %v538 = vpop.permute.xlu0 %537
        %539 = vrot.lane.b32.xlu0 %v527, 126
        %v540 = vpop.permute.xlu0 %539
        %541 = vrot.lane.b32.xlu0 %v532, 126
        %v542 = vpop.permute.xlu0 %541
        %v543 = vsel %vm308, %v538, %v540
        %v544 = vsel %vm308, %v540, %v542
        %v547 = vsel %vm298, %v543, 0.0
        %v548 = vsel %vm299, %v544, 0.0
        %549 = vrot.lane.b32.xlu0 %v531, 112
        %v550 = vpop.permute.xlu0 %549
        %551 = vrot.lane.b32.xlu0 %v527, 112
        %v552 = vpop.permute.xlu0 %551
        %553 = vrot.lane.b32.xlu0 %v532, 112
        %v554 = vpop.permute.xlu0 %553
        %v555 = vsel %vm321, %v550, %v552
        %v556 = vsel %vm321, %v552, %v554
        %v559 = vsel %vm292, %v555, 0.0
        %v560 = vsel %vm293, %v556, 0.0
        %561 = vrot.lane.b32.xlu0 %v531, 110
        %v562 = vpop.permute.xlu0 %561
        %563 = vrot.lane.b32.xlu0 %v527, 110
        %v564 = vpop.permute.xlu0 %563
        %565 = vrot.lane.b32.xlu0 %v532, 110
        %v566 = vpop.permute.xlu0 %565
        %v567 = vsel %vm334, %v562, %v564
        %v568 = vsel %vm334, %v564, %v566
        %v571 = vsel %vm298, %v567, 0.0
        %v572 = vsel %vm299, %v568, 0.0
        %573 = vrot.lane.b32.xlu0 %v531, 96
        %v574 = vpop.permute.xlu0 %573
        %575 = vrot.lane.b32.xlu0 %v527, 96
        %v576 = vpop.permute.xlu0 %575
        %577 = vrot.lane.b32.xlu0 %v532, 96
        %v578 = vpop.permute.xlu0 %577
        %v579 = vsel %vm347, %v574, %v576
        %v580 = vsel %vm347, %v576, %v578
        %v583 = vsel %vm292, %v579, 0.0
        %v584 = vsel %vm293, %v580, 0.0
        %585 = vrot.lane.b32.xlu0 %v531, 94
        %v586 = vpop.permute.xlu0 %585
        %587 = vrot.lane.b32.xlu0 %v527, 94
        %v588 = vpop.permute.xlu0 %587
        %589 = vrot.lane.b32.xlu0 %v532, 94
        %v590 = vpop.permute.xlu0 %589
        %v591 = vsel %vm360, %v586, %v588
        %v592 = vsel %vm360, %v588, %v590
        %v595 = vsel %vm298, %v591, 0.0
        %v596 = vsel %vm299, %v592, 0.0
        %v597 = vrot.slane %v531, 6
        %v598 = vrot.slane %v527, 6
        %v599 = vrot.slane %v532, 6
        %600 = vrot.lane.b32.xlu0 %v597, 127
        %v601 = vpop.permute.xlu0 %600
        %602 = vrot.lane.b32.xlu0 %v598, 127
        %v603 = vpop.permute.xlu0 %602
        %604 = vrot.lane.b32.xlu0 %v599, 127
        %v605 = vpop.permute.xlu0 %604
        %v606 = vsel %vm376, %v601, %v603
        %v607 = vsel %vm376, %v603, %v605
        %v612 = vrot.slane %v547, 4
        %v613 = vrot.slane %v548, 4
        %v618 = vrot.slane %v559, 2
        %v619 = vrot.slane %v560, 2
        %622 = vrot.lane.b32.xlu0 %v531, 111
        %v623 = vpop.permute.xlu0 %622
        %624 = vrot.lane.b32.xlu0 %v527, 111
        %v625 = vpop.permute.xlu0 %624
        %626 = vrot.lane.b32.xlu0 %v532, 111
        %v627 = vpop.permute.xlu0 %626
        %v628 = vsel %vm393, %v623, %v625
        %v629 = vsel %vm393, %v625, %v627
        %v634 = vrot.slane %v571, 6
        %v635 = vrot.slane %v572, 6
        %v640 = vrot.slane %v583, 4
        %v641 = vrot.slane %v584, 4
        %v644 = vrot.slane %v531, 2
        %v645 = vrot.slane %v527, 2
        %v646 = vrot.slane %v532, 2
        %647 = vrot.lane.b32.xlu0 %v644, 95
        %v648 = vpop.permute.xlu0 %647
        %649 = vrot.lane.b32.xlu0 %v645, 95
        %v650 = vpop.permute.xlu0 %649
        %651 = vrot.lane.b32.xlu0 %v646, 95
        %v652 = vpop.permute.xlu0 %651
        %v653 = vsel %vm410, %v648, %v650
        %v654 = vsel %vm410, %v650, %v652
        %vm657 = vcmask 1041408
        %v658 = vsel %vm657, %v533, %v606
        %v659 = vsel %vm657, %v534, %v607
        %v660 = vsel %vm415, %v658, %v612
        %v661 = vsel %vm415, %v659, %v613
        %vm662 = vcmask 1045504
        %v663 = vsel %vm662, %v660, %v618
        %v664 = vsel %vm662, %v661, %v619
        %v665 = vsel %vm657, %v628, %v634
        %v666 = vsel %vm657, %v629, %v635
        %v667 = vsel %vm415, %v665, %v640
        %v668 = vsel %vm415, %v666, %v641
        %v669 = vsel %vm662, %v667, %v653
        %v670 = vsel %vm662, %v668, %v654
        %v671 = vld [vmem:[%s3] sm:$0xf]
        %v672 = vld [vmem:[%s4] sm:$0xf]
        %674 = vset.pattern.permute.xlu0 0
        %675 = vperm.xlu0 %674, %v672
        %v676 = vpop.permute.xlu0 %675
        %vm678 = vcmask 146432
        %v680 = vsel %vm678, %v671, 0
        %v683 = vsel %vm657, %v595, 0
        %v686 = vsel %vm657, %v596, 0
        %688 = vmatpush.msra.mxu0 0.0
        %689 = vmatpush.msra.mxu0 0.0
        %690 = vmatpush.msra.mxu0 0.0
        %691 = vmatpush.msra.mxu0 0.0
        %692 = vmatpush.msra.mxu0 0.0
        %693 = vmatpush.msra.mxu0 0.0
        %694 = vmatpush.msra.mxu0 0.0
        %695 = vmatpush.msra.mxu0 0.0
        %696 = vmatpush.msra.mxu0 0.0
        %697 = vmatpush.msra.mxu0 0.0
        %698 = vmatpush.msra.mxu0 0.0
        %699 = vmatpush.msra.mxu0 0.0
        %700 = vmatpush.msra.mxu0 0.0
        %701 = vmatpush.msra.mxu0 %v683
        %702 = vmatpush.msra.mxu0 %v669
        %703 = vmatpush.msra.mxu0 %v663
        %704 = vmatmul.f32.gmra.mxu0 %v680
        %v705 = vpop.f32.mrf.mxu0
        %v706 = vadd.f32 %v676, %v705
        %707 = vdwg.mxu0
        %708 = vmatpush.msra.mxu0 0.0
        %709 = vmatpush.msra.mxu0 0.0
        %710 = vmatpush.msra.mxu0 0.0
        %711 = vmatpush.msra.mxu0 0.0
        %712 = vmatpush.msra.mxu0 0.0
        %713 = vmatpush.msra.mxu0 0.0
        %714 = vmatpush.msra.mxu0 0.0
        %715 = vmatpush.msra.mxu0 0.0
        %716 = vmatpush.msra.mxu0 0.0
        %717 = vmatpush.msra.mxu0 0.0
        %718 = vmatpush.msra.mxu0 0.0
        %719 = vmatpush.msra.mxu0 0.0
        %720 = vmatpush.msra.mxu0 0.0
        %721 = vmatpush.msra.mxu0 %v686
        %722 = vmatpush.msra.mxu0 %v670
        %723 = vmatpush.msra.mxu0 %v664
        %724 = vmatmul.f32.gmra.mxu0 %v680
        %v725 = vpop.f32.mrf.mxu0
        %v726 = vadd.f32 %v676, %v725
        %727 = vdwg.mxu0
        %v728 = vxor.u32 %v706, 2147483648
        %v729 = vxor.u32 %v726, 2147483648
        %v730 = vmul.f32 %v728, 1.442695
        %v731 = vpow.pop %v730
        %v732 = vmul.f32 %v729, 1.442695
        %v733 = vpow.pop %v732
        %v734 = vadd.f32 %v731, 1.0
        %v735 = vadd.f32 %v733, 1.0
        %v736 = vrcp.pop %v734
        %v737 = vmul.f32 %v734, %v736
        %v738 = vsub.f32 1.0, %v737
        %v739 = vmul.f32 %v736, %v738
        %v740 = vadd.f32 %v736, %v739
        %vm741 = vweird.f32 %v734
        %vm742 = vweird.f32 %v736
        %vm743 = vmor %vm741, %vm742
        %v744 = vsel %vm743, %v736, %v740
        %v745 = vand.u32 2147483647, %v734
        %vm746 = vcmp.eq.f32.partialorder %v745, 8.507059e+37
        %v747 = vand.u32 %v734, 2147483648
        %v748 = vor.u32 1.1754944e-38, %v747
        %v749 = vsel %vm746, %v748, %v744
        %v750 = vmul.f32 1.0, %v749
        %v751 = vrcp.pop %v735
        %v752 = vmul.f32 %v735, %v751
        %v753 = vsub.f32 1.0, %v752
        %v754 = vmul.f32 %v751, %v753
        %v755 = vadd.f32 %v751, %v754
        %vm756 = vweird.f32 %v735
        %vm757 = vweird.f32 %v751
        %vm758 = vmor %vm756, %vm757
        %v759 = vsel %vm758, %v751, %v755
        %v760 = vand.u32 2147483647, %v735
        %vm761 = vcmp.eq.f32.partialorder %v760, 8.507059e+37
        %v762 = vand.u32 %v735, 2147483648
        %v763 = vor.u32 1.1754944e-38, %v762
        %v764 = vsel %vm761, %v763, %v759
        %v765 = vmul.f32 1.0, %v764
        %v766 = vmul.f32 %v706, %v750
        %v767 = vmul.f32 %v726, %v765
        %768 = vst [vmem:[#allocation1] ss:$2 sm:$0xff] %v243
        %v769 = vld.sshfl [vmem:[#allocation1] sm:$0xff pattern:$0x75316420]
        %v770 = vld.sshfl [vmem:[#allocation1 + $0x8] sm:$0xff pattern:$0x75316420]
        %v773 = vadd.f32 %v766, %v769
        %v774 = vadd.f32 %v767, %v770
        %v777 = vrot.slane %v774, 4
        %v778 = vsel %vm415, %v773, %v777
        %780 = vst [vmem:[%s242] sm:$0xff] %v778
        %s781 = sand.u32 %s140, 1
        %s782 = scalar_lea.sflag [#allocation4], %s781
        %s783 = sand.u32 %s140, 1
        %s784 = smul.addr %s783, 8
        %s785 = scalar_lea.vmem [#allocation5], %s784
        // Predicated region
        $region45: #{tpu_custom_call.1} parent=39 // pred_check
          %p786 = pneg %p150
        $region46: #{tpu_custom_call.1} parent=39 // pred_check_branch
          %788 = sbr.rel (%p786) target = $region48
        $region47: #{tpu_custom_call.1} parent=39 // pred_region
          %790 = vsyncadd %s782, 0
          %s791 = smul.addr %s22, 2
          %s792 = smul.addr %s791, 4
          %s793 = scalar_lea.hbm %s5, %s792
          %s795 = sshll.u32 %s785, 4
          %s796 = int_to_ptr.vmem [resolvable:$true] %s795
          %s797 = sshll.u32 %s793, 4
          %s798 = int_to_ptr.hbm [resolvable:$true] %s797
          %800 = dma.vmem_to_hbm [thread:$0]  %s796, 128, %s798, %s782
        $region48: #{tpu_custom_call.1} parent=39 // pred_fallthru
          _
      $region40: #{tpu_custom_call.1} parent=5 // pred_fallthru
        _
      %p801 = scmp.le.s32.totalorder 2, %s17
      // Predicated region
      $region49: #{tpu_custom_call.1} parent=5 // pred_check
        %p802 = pneg %p801
      $region50: #{tpu_custom_call.1} parent=5 // pred_check_branch
        %804 = sbr.rel (%p802) target = $region52
      $region51: #{tpu_custom_call.1} parent=5 // pred_region
        %s805 = ssub.s32 %s17, 2
        // Predicated region
        $region53: #{tpu_custom_call.1} parent=51 // pred_check
          %p806 = pneg %p156
        $region54: #{tpu_custom_call.1} parent=51 // pred_check_branch
          %808 = sbr.rel (%p806) target = $region56
        $region55: #{tpu_custom_call.1} parent=51 // pred_region
          %s809 = sand.u32 %s141, 1
          %s810 = scalar_lea.sflag [#allocation4], %s809
          %s811 = sand.u32 %s141, 1
          %s812 = smul.addr %s811, 8
          %s813 = scalar_lea.vmem [#allocation5], %s812
          %815 = dma.done %s810, 128
        $region56: #{tpu_custom_call.1} parent=51 // pred_fallthru
          _
      $region52: #{tpu_custom_call.1} parent=5 // pred_fallthru
        _
    $region6: #{tpu_custom_call.1} parent=1 // loop_footer
      %s21 = sadd.s32 1, %s17
    $region7: #{tpu_custom_call.1} parent=1 // loop_footer_branch
      %16 = sbr.rel target = $region3
    $region8: #{tpu_custom_call.1} parent=1 // loop_exit
      _
    %816 = vsyncpa [#allocation3], 1
    %s817 = scalar_lea.sflag [#allocation3], 1
    %818 = vsyncpa %s817, 1
    %819 = vsyncpa [#allocation4], 1
    %s820 = scalar_lea.sflag [#allocation4], 1
    %821 = vsyncpa %s820, 1

</llo_original>
